<compile_context>
chip_gen: v7x
topology: tpu7x:2x2x1
jax: 0.10.0
libtpu: 0.0.40
codegen_flags: <defaults>
</compile_context>

<pallas_src>
import jax
import jax.numpy as jnp
from jax.experimental import pallas as pl
from jax.experimental.pallas import tpu as pltpu

H = W = 28           # input spatial size
PH = PW = 14         # pooled spatial size
F_IN = PH * PW       # 196
F_OUT = 10
F_PAD = 128          # lane-dense padded output width


def _round_up(a, b):
    return (a + b - 1) // b * b


def _choose_tb(n, tb_max=1024):
    """Batch-tile size: multiple of 16 (bf16 sublane packing), as large as
    possible up to tb_max, and >=2 even grid steps when the batch allows so
    v7x megacore ('parallel') keeps both TensorCores busy."""
    n16 = _round_up(max(n, 1), 16)
    if n16 > tb_max:
        return tb_max                      # grid >= 2 steps automatically
    if n16 >= 32:
        return _round_up((n16 + 1) // 2, 16)   # exactly 2 even grid steps
    return n16                             # tiny batch: single small tile


def avgnn_kernel(x_ref, m_ref, b_ref, o_ref):
    # x_ref: (TB, 784) f32    flattened input images (batch tile)
    # m_ref: (784, 128) bf16  pooling-fused FC weight, zero-padded past col 10
    # b_ref: (1, 128)  f32    FC bias, zero-padded past col 10
    # o_ref: (TB, 128) bf16   padded logits
    x_bf = x_ref[...].astype(jnp.bfloat16)        # fused cast (VPU slack; DMA-bound)
    acc = jnp.dot(x_bf, m_ref[...], preferred_element_type=jnp.float32)
    o_ref[...] = (acc + b_ref[...]).astype(o_ref.dtype)   # f32 bias add, bf16 store


def prepare_params(fc_w, fc_b):
    """Fold the 2x2 average pool into the FC weight (done once, outside the
    hot path).  Returns bf16 M (784, 128) and f32 bias (1, 128)."""
    w_img = fc_w.reshape(F_OUT, PH, PW).astype(jnp.float32)            # (10,14,14)
    # upsample each pooled-pixel weight to its 2x2 input footprint, * 1/4
    w_up = jnp.repeat(jnp.repeat(w_img, 2, axis=1), 2, axis=2) * 0.25  # (10,28,28)
    m = w_up.reshape(F_OUT, H * W).T                                   # (784, 10)
    m_pad = (jnp.zeros((H * W, F_PAD), jnp.bfloat16)
             .at[:, :F_OUT].set(m.astype(jnp.bfloat16)))
    b_pad = (jnp.zeros((1, F_PAD), jnp.float32)
             .at[0, :F_OUT].set(fc_b.astype(jnp.float32)))
    return m_pad, b_pad


def avgnn_forward(x, m_pad, b_pad, *, tb_max=1024):
    """x: (N, 1, 28, 28) f32; m_pad: (784, 128) bf16; b_pad: (1, 128) f32
    -> (N, 10) f32."""
    n = x.shape[0]
    # Reshape only -- NO dtype cast here; the cast is fused into the kernel.
    x_flat = x.reshape(n, H * W)

    tb = _choose_tb(n, tb_max)
    n_pad = _round_up(n, tb)
    if n_pad != n:
        x_flat = jnp.pad(x_flat, ((0, n_pad - n), (0, 0)))

    out_pad = pl.pallas_call(
        avgnn_kernel,
        out_shape=jax.ShapeDtypeStruct((n_pad, F_PAD), jnp.bfloat16),
        grid_spec=pltpu.PrefetchScalarGridSpec(
            num_scalar_prefetch=0,
            grid=(n_pad // tb,),
            in_specs=[
                pl.BlockSpec((tb, H * W), lambda i: (i, 0)),     # batch-tiled x (f32)
                pl.BlockSpec((H * W, F_PAD), lambda i: (0, 0)),  # full weight (const)
                pl.BlockSpec((1, F_PAD), lambda i: (0, 0)),      # full bias (const)
            ],
            out_specs=pl.BlockSpec((tb, F_PAD), lambda i: (i, 0)),
        ),
        compiler_params=pltpu.CompilerParams(
            dimension_semantics=("parallel",)),   # megacore sharding on v7x
    )(x_flat, m_pad, b_pad)

    # Tiny slice/cast outside the kernel (consumers wanting raw padded bf16
    # logits can take out_pad directly instead).
    return out_pad[:n, :F_OUT].astype(jnp.float32)


def _reference(x, fc_w, fc_b):
    n = x.shape[0]
    avg = jnp.mean(x.reshape(n, 1, PH, 2, PW, 2), axis=(3, 5))
    return avg.reshape(n, -1) @ fc_w.T + fc_b


if __name__ == "__main__":
    key = jax.random.PRNGKey(0)
    kx, kw, kb, kx2 = jax.random.split(key, 4)

    # Deterministic Linear(196, 10) params (PyTorch-style uniform init bounds).
    bound = 1.0 / (F_IN ** 0.5)
    fc_w = jax.random.uniform(kw, (F_OUT, F_IN), jnp.float32, -bound, bound)
    fc_b = jax.random.uniform(kb, (F_OUT,), jnp.float32, -bound, bound)
    m_pad, b_pad = prepare_params(fc_w, fc_b)      # one-time weight folding

    fwd = jax.jit(lambda xs: avgnn_forward(xs, m_pad, b_pad))

    # Primary small test (matches the module: batch=2, 1x28x28 images).
    N = 2
    x = jax.random.normal(kx, (N, 1, H, W), jnp.float32)
    out = jax.block_until_ready(fwd(x))
    ref = _reference(x, fc_w, fc_b)
    assert out.shape == (N, F_OUT), out.shape
    assert jnp.allclose(out, ref, rtol=2e-2, atol=2e-2), (out, ref)

    # Secondary check exercising the multi-step grid + batch padding path.
    N2 = 37
    x2 = jax.random.normal(kx2, (N2, 1, H, W), jnp.float32)
    out2 = jax.block_until_ready(fwd(x2))
    ref2 = _reference(x2, fc_w, fc_b)
    assert out2.shape == (N2, F_OUT), out2.shape
    assert jnp.allclose(out2, ref2, rtol=2e-2, atol=2e-2), (out2, ref2)

    print("KERNEL_OK")
</pallas_src>

<mosaic_0001>
module attributes {stable_mosaic.version = 11 : i64} {
  func.func @avgnn_kernel(%arg0: i32, %arg1: memref<16x784xf32, #tpu.memory_space<vmem>>, %arg2: memref<784x128xbf16, #tpu.memory_space<vmem>>, %arg3: memref<1x128xf32, #tpu.memory_space<vmem>>, %arg4: memref<16x128xbf16, #tpu.memory_space<vmem>>) attributes {dimension_semantics = [#tpu.dimension_semantics<parallel>], iteration_bounds = array<i64: 1>, scalar_prefetch = 0 : i64, scratch_operands = 0 : i64, tpu.core_type = #tpu.core_type<tc>, window_params = [{transform_indices = @transform_0, window_bounds = array<i64: 16, 784>}, {pipeline_mode = #tpu.pipeline_mode<synchronous>, transform_indices = @transform_1, window_bounds = array<i64: 784, 128>}, {pipeline_mode = #tpu.pipeline_mode<synchronous>, transform_indices = @transform_2, window_bounds = array<i64: 1, 128>}, {transform_indices = @transform_3, window_bounds = array<i64: 16, 128>}]} {
    %c0 = arith.constant 0 : index
    %c0_0 = arith.constant 0 : index
    %0 = vector.load %arg1[%c0, %c0_0] : memref<16x784xf32, #tpu.memory_space<vmem>>, vector<16x784xf32>
    %1 = arith.truncf %0 : vector<16x784xf32> to vector<16x784xbf16>
    %c0_1 = arith.constant 0 : index
    %c0_2 = arith.constant 0 : index
    %2 = vector.load %arg2[%c0_1, %c0_2] : memref<784x128xbf16, #tpu.memory_space<vmem>>, vector<784x128xbf16>
    %cst = arith.constant dense<0.000000e+00> : vector<16x128xf32>
    %3 = tpu.matmul %1, %2, %cst {dimension_numbers = #tpu.dot_dimension_numbers<[1], [0], [0], [1], [0, 0, 1, 1], [], []>} : vector<16x784xbf16>, vector<784x128xbf16>, vector<16x128xf32> -> vector<16x128xf32>
    %c0_3 = arith.constant 0 : index
    %c0_4 = arith.constant 0 : index
    %4 = vector.load %arg3[%c0_3, %c0_4] : memref<1x128xf32, #tpu.memory_space<vmem>>, vector<1x128xf32>
    %5 = vector.broadcast %4 : vector<1x128xf32> to vector<16x128xf32>
    %6 = arith.addf %3, %5 : vector<16x128xf32>
    %7 = arith.truncf %6 : vector<16x128xf32> to vector<16x128xbf16>
    %c0_5 = arith.constant 0 : index
    %c0_6 = arith.constant 0 : index
    %8 = vector.load %arg4[%c0_5, %c0_6] : memref<16x128xbf16, #tpu.memory_space<vmem>>, vector<16x128xbf16>
    tpu.vector_store %arg4[%c0_5, %c0_6], %7 {strides = array<i32>} : memref<16x128xbf16, #tpu.memory_space<vmem>>, vector<16x128xbf16>,
    return
  }
  func.func @transform_0(%arg0: i32) -> (i32, i32) {
    %c0_i32 = arith.constant 0 : i32
    %c0_i32_0 = arith.constant 0 : i32
    return %arg0, %c0_i32 : i32, i32
  }
  func.func @transform_1(%arg0: i32) -> (i32, i32) {
    %c0_i32 = arith.constant 0 : i32
    %c0_i32_0 = arith.constant 0 : i32
    %c0_i32_1 = arith.constant 0 : i32
    return %c0_i32, %c0_i32_0 : i32, i32
  }
  func.func @transform_2(%arg0: i32) -> (i32, i32) {
    %c0_i32 = arith.constant 0 : i32
    %c0_i32_0 = arith.constant 0 : i32
    %c0_i32_1 = arith.constant 0 : i32
    return %c0_i32, %c0_i32_0 : i32, i32
  }
  func.func @transform_3(%arg0: i32) -> (i32, i32) {
    %c0_i32 = arith.constant 0 : i32
    %c0_i32_0 = arith.constant 0 : i32
    return %arg0, %c0_i32 : i32, i32
  }
}

</mosaic_0001>

<llo_original>
// kernel: _lambda_.1
$region0: #{_lambda_.1}
  #allocation0 [shape = 'u32[]', space=smem, size = 0x4, offset = 0x4, fixed_abs, tag = 'smem constant byte address 0x4 - core index']
  #allocation1 [shape = 'u32[144,128]{1,0:T(1,128)}', space=vmem, size = 0x12000, scoped, tag = 'internal scratch']
  %s0 = inlined_call_operand.vmem [shape: f32[16,784], index: 0, kind: input, shape index: {}]
  %s1 = inlined_call_operand.hbm [shape: bf16[784,128], index: 1, kind: input, shape index: {}]
  %s2 = inlined_call_operand.vmem [shape: f32[1,128], index: 2, kind: input, shape index: {}]
  %s3 = inlined_call_operand.vmem [shape: bf16[16,128], index: 3, kind: output, shape index: {}]
  %s4 = sld [smem:[#allocation0]]
  $region26: #{_lambda_.1} parent=0
    _
  %s6 = ssub.s32 1, %s4
  %s7 = scalar_select 0, %s6, %s4
  $region1: #{_lambda_.1} parent=0
    #allocation2 [shape = 'u8[200704]{0}', space=vmem, size = 0x31000, scoped, tag = 'input window, operand 1, single buffered']
    #allocation3 [shape = 's32[1]{0}', space=sflag, size = 0x4, scoped, tag = 'scoped memory for _lambda_.1']
    %8 = vsyncpa [#allocation3], 0
    // Predicated region
    $region2: #{_lambda_.1} parent=1 // pred_check
      _
    $region3: #{_lambda_.1} parent=1 // pred_check_branch
      %10 = sbr.rel (0) target = $region5
    $region4: #{_lambda_.1} parent=1 // pred_region
      _
    $region5: #{_lambda_.1} parent=1 // pred_fallthru
      _
    // Predicated region
    $region6: #{_lambda_.1} parent=1 // pred_check
      _
    $region7: #{_lambda_.1} parent=1 // pred_check_branch
      %12 = sbr.rel (0) target = $region9
    $region8: #{_lambda_.1} parent=1 // pred_region
      %s14 = ssub.s32 6272, 6272
      %15 = vsyncadd [#allocation3], %s14
      %s16 = sshll.u32 [#allocation2], 4
      %s17 = int_to_ptr.vmem [resolvable:$true] %s16
      %22 = dma.hbm_to_vmem [thread:$0]  %s1, 6272, %s17, [#allocation3], 64, 64, 4
    $region9: #{_lambda_.1} parent=1 // pred_fallthru
      _
    // Predicated region
    $region10: #{_lambda_.1} parent=1 // pred_check
      _
    $region11: #{_lambda_.1} parent=1 // pred_check_branch
      %24 = sbr.rel (0) target = $region13
    $region12: #{_lambda_.1} parent=1 // pred_region
      _
    $region13: #{_lambda_.1} parent=1 // pred_fallthru
      _
    // Predicated region
    $region14: #{_lambda_.1} parent=1 // pred_check
      _
    $region15: #{_lambda_.1} parent=1 // pred_check_branch
      %26 = sbr.rel (0) target = $region17
    $region16: #{_lambda_.1} parent=1 // pred_region
      %27 = dma.done [#allocation3], 6272
    $region17: #{_lambda_.1} parent=1 // pred_fallthru
      _
    %v29 = vld [vmem:[%s0] sm:$0xff]
    %v30 = vld [vmem:[%s0 + $0x8] sm:$0xff]
    %v31 = vld [vmem:[%s0 + $0x10] sm:$0xff]
    %v32 = vld [vmem:[%s0 + $0x18] sm:$0xff]
    %v33 = vld [vmem:[%s0 + $0x20] sm:$0xff]
    %v34 = vld [vmem:[%s0 + $0x28] sm:$0xff]
    %v35 = vld [vmem:[%s0 + $0x30] sm:$0xff]
    %v36 = vld [vmem:[%s0 + $0x38] sm:$0xff]
    %v37 = vld [vmem:[%s0 + $0x40] sm:$0xff]
    %v38 = vld [vmem:[%s0 + $0x48] sm:$0xff]
    %v39 = vld [vmem:[%s0 + $0x50] sm:$0xff]
    %v40 = vld [vmem:[%s0 + $0x58] sm:$0xff]
    %v41 = vld [vmem:[%s0 + $0x60] sm:$0xff]
    %v42 = vld [vmem:[%s0 + $0x68] sm:$0xff]
    %v43 = vpack.c.bf16 %v36, %v29
    %v44 = vpack.c.bf16 %v37, %v30
    %v45 = vpack.c.bf16 %v38, %v31
    %v46 = vpack.c.bf16 %v39, %v32
    %v47 = vpack.c.bf16 %v40, %v33
    %v48 = vpack.c.bf16 %v41, %v34
    %v49 = vpack.c.bf16 %v42, %v35
    %v50 = vld [vmem:[#allocation2] sm:$0xf]
    %v51 = vld [vmem:[#allocation2 + $0x4] sm:$0xf]
    %v52 = vld [vmem:[#allocation2 + $0x8] sm:$0xf]
    %v53 = vld [vmem:[#allocation2 + $0xc] sm:$0xf]
    %v54 = vld [vmem:[#allocation2 + $0x10] sm:$0xf]
    %v55 = vld [vmem:[#allocation2 + $0x14] sm:$0xf]
    %v56 = vld [vmem:[#allocation2 + $0x18] sm:$0xf]
    %v57 = vld [vmem:[#allocation2 + $0x1c] sm:$0xf]
    %v58 = vld [vmem:[#allocation2 + $0x20] sm:$0xf]
    %v59 = vld [vmem:[#allocation2 + $0x24] sm:$0xf]
    %v60 = vld [vmem:[#allocation2 + $0x28] sm:$0xf]
    %v61 = vld [vmem:[#allocation2 + $0x2c] sm:$0xf]
    %v62 = vld [vmem:[#allocation2 + $0x30] sm:$0xf]
    %v63 = vld [vmem:[#allocation2 + $0x34] sm:$0xf]
    %v64 = vld [vmem:[#allocation2 + $0x38] sm:$0xf]
    %v65 = vld [vmem:[#allocation2 + $0x3c] sm:$0xf]
    %v66 = vld [vmem:[#allocation2 + $0x40] sm:$0xf]
    %v67 = vld [vmem:[#allocation2 + $0x44] sm:$0xf]
    %v68 = vld [vmem:[#allocation2 + $0x48] sm:$0xf]
    %v69 = vld [vmem:[#allocation2 + $0x4c] sm:$0xf]
    %v70 = vld [vmem:[#allocation2 + $0x50] sm:$0xf]
    %v71 = vld [vmem:[#allocation2 + $0x54] sm:$0xf]
    %v72 = vld [vmem:[#allocation2 + $0x58] sm:$0xf]
    %v73 = vld [vmem:[#allocation2 + $0x5c] sm:$0xf]
    %v74 = vld [vmem:[#allocation2 + $0x60] sm:$0xf]
    %v75 = vld [vmem:[#allocation2 + $0x64] sm:$0xf]
    %v76 = vld [vmem:[#allocation2 + $0x68] sm:$0xf]
    %v77 = vld [vmem:[#allocation2 + $0x6c] sm:$0xf]
    %v78 = vld [vmem:[#allocation2 + $0x70] sm:$0xf]
    %v79 = vld [vmem:[#allocation2 + $0x74] sm:$0xf]
    %v80 = vld [vmem:[#allocation2 + $0x78] sm:$0xf]
    %v81 = vld [vmem:[#allocation2 + $0x7c] sm:$0xf]
    %v82 = vld [vmem:[#allocation2 + $0x80] sm:$0xf]
    %v83 = vld [vmem:[#allocation2 + $0x84] sm:$0xf]
    %v84 = vld [vmem:[#allocation2 + $0x88] sm:$0xf]
    %v85 = vld [vmem:[#allocation2 + $0x8c] sm:$0xf]
    %v86 = vld [vmem:[#allocation2 + $0x90] sm:$0xf]
    %v87 = vld [vmem:[#allocation2 + $0x94] sm:$0xf]
    %v88 = vld [vmem:[#allocation2 + $0x98] sm:$0xf]
    %v89 = vld [vmem:[#allocation2 + $0x9c] sm:$0xf]
    %v90 = vld [vmem:[#allocation2 + $0xa0] sm:$0xf]
    %v91 = vld [vmem:[#allocation2 + $0xa4] sm:$0xf]
    %v92 = vld [vmem:[#allocation2 + $0xa8] sm:$0xf]
    %v93 = vld [vmem:[#allocation2 + $0xac] sm:$0xf]
    %v94 = vld [vmem:[#allocation2 + $0xb0] sm:$0xf]
    %v95 = vld [vmem:[#allocation2 + $0xb4] sm:$0xf]
    %v96 = vld [vmem:[#allocation2 + $0xb8] sm:$0xf]
    %v97 = vld [vmem:[#allocation2 + $0xbc] sm:$0xf]
    %v98 = vld [vmem:[#allocation2 + $0xc0] sm:$0xf]
    %v99 = vld [vmem:[#allocation2 + $0xc4] sm:$0xf]
    %v100 = vld [vmem:[#allocation2 + $0xc8] sm:$0xf]
    %v101 = vld [vmem:[#allocation2 + $0xcc] sm:$0xf]
    %v102 = vld [vmem:[#allocation2 + $0xd0] sm:$0xf]
    %v103 = vld [vmem:[#allocation2 + $0xd4] sm:$0xf]
    %v104 = vld [vmem:[#allocation2 + $0xd8] sm:$0xf]
    %v105 = vld [vmem:[#allocation2 + $0xdc] sm:$0xf]
    %v106 = vld [vmem:[#allocation2 + $0xe0] sm:$0xf]
    %v107 = vld [vmem:[#allocation2 + $0xe4] sm:$0xf]
    %v108 = vld [vmem:[#allocation2 + $0xe8] sm:$0xf]
    %v109 = vld [vmem:[#allocation2 + $0xec] sm:$0xf]
    %v110 = vld [vmem:[#allocation2 + $0xf0] sm:$0xf]
    %v111 = vld [vmem:[#allocation2 + $0xf4] sm:$0xf]
    %v112 = vld [vmem:[#allocation2 + $0xf8] sm:$0xf]
    %v113 = vld [vmem:[#allocation2 + $0xfc] sm:$0xf]
    %v114 = vld [vmem:[#allocation2 + $0x100] sm:$0xf]
    %v115 = vld [vmem:[#allocation2 + $0x104] sm:$0xf]
    %v116 = vld [vmem:[#allocation2 + $0x108] sm:$0xf]
    %v117 = vld [vmem:[#allocation2 + $0x10c] sm:$0xf]
    %v118 = vld [vmem:[#allocation2 + $0x110] sm:$0xf]
    %v119 = vld [vmem:[#allocation2 + $0x114] sm:$0xf]
    %v120 = vld [vmem:[#allocation2 + $0x118] sm:$0xf]
    %v121 = vld [vmem:[#allocation2 + $0x11c] sm:$0xf]
    %v122 = vld [vmem:[#allocation2 + $0x120] sm:$0xf]
    %v123 = vld [vmem:[#allocation2 + $0x124] sm:$0xf]
    %v124 = vld [vmem:[#allocation2 + $0x128] sm:$0xf]
    %v125 = vld [vmem:[#allocation2 + $0x12c] sm:$0xf]
    %v126 = vld [vmem:[#allocation2 + $0x130] sm:$0xf]
    %v127 = vld [vmem:[#allocation2 + $0x134] sm:$0xf]
    %v128 = vld [vmem:[#allocation2 + $0x138] sm:$0xf]
    %v129 = vld [vmem:[#allocation2 + $0x13c] sm:$0xf]
    %v130 = vld [vmem:[#allocation2 + $0x140] sm:$0xf]
    %v131 = vld [vmem:[#allocation2 + $0x144] sm:$0xf]
    %v132 = vld [vmem:[#allocation2 + $0x148] sm:$0xf]
    %v133 = vld [vmem:[#allocation2 + $0x14c] sm:$0xf]
    %v134 = vld [vmem:[#allocation2 + $0x150] sm:$0xf]
    %v135 = vld [vmem:[#allocation2 + $0x154] sm:$0xf]
    %v136 = vld [vmem:[#allocation2 + $0x158] sm:$0xf]
    %v137 = vld [vmem:[#allocation2 + $0x15c] sm:$0xf]
    %v138 = vld [vmem:[#allocation2 + $0x160] sm:$0xf]
    %v139 = vld [vmem:[#allocation2 + $0x164] sm:$0xf]
    %v140 = vld [vmem:[#allocation2 + $0x168] sm:$0xf]
    %v141 = vld [vmem:[#allocation2 + $0x16c] sm:$0xf]
    %v142 = vld [vmem:[#allocation2 + $0x170] sm:$0xf]
    %v143 = vld [vmem:[#allocation2 + $0x174] sm:$0xf]
    %v144 = vld [vmem:[#allocation2 + $0x178] sm:$0xf]
    %v145 = vld [vmem:[#allocation2 + $0x17c] sm:$0xf]
    %v146 = vld [vmem:[#allocation2 + $0x180] sm:$0xf]
    %v147 = vld [vmem:[#allocation2 + $0x184] sm:$0xf]
    %v148 = vld [vmem:[%s2] sm:$0x1]
    %v150 = vlaneseq
    %v151 = vshrl.u32 %v150, 7
    %v152 = vsub.s32 0, %v151
    %v153 = vrot.slane %v148, %v152
    %v253 = vunpack.c.l.b16 %v50
    %v254 = vunpack.c.l.b16 %v51
    %v255 = vunpack.c.l.b16 %v52
    %v256 = vunpack.c.l.b16 %v53
    %v257 = vunpack.c.l.b16 %v54
    %v258 = vunpack.c.l.b16 %v55
    %v259 = vunpack.c.l.b16 %v56
    %v260 = vunpack.c.l.b16 %v57
    %v261 = vunpack.c.l.b16 %v58
    %v262 = vunpack.c.l.b16 %v59
    %v263 = vunpack.c.l.b16 %v60
    %v264 = vunpack.c.l.b16 %v61
    %v265 = vunpack.c.l.b16 %v62
    %v266 = vunpack.c.l.b16 %v63
    %v267 = vunpack.c.l.b16 %v64
    %v268 = vunpack.c.l.b16 %v65
    %v269 = vunpack.c.l.b16 %v66
    %v270 = vunpack.c.l.b16 %v67
    %v271 = vunpack.c.l.b16 %v68
    %v272 = vunpack.c.l.b16 %v69
    %v273 = vunpack.c.l.b16 %v70
    %v274 = vunpack.c.l.b16 %v71
    %v275 = vunpack.c.l.b16 %v72
    %v276 = vunpack.c.l.b16 %v73
    %v277 = vunpack.c.l.b16 %v74
    %v278 = vunpack.c.l.b16 %v75
    %v279 = vunpack.c.l.b16 %v76
    %v280 = vunpack.c.l.b16 %v77
    %v281 = vunpack.c.l.b16 %v78
    %v282 = vunpack.c.l.b16 %v79
    %v283 = vunpack.c.l.b16 %v80
    %v284 = vunpack.c.l.b16 %v81
    %v285 = vunpack.c.l.b16 %v82
    %v286 = vunpack.c.l.b16 %v83
    %v287 = vunpack.c.l.b16 %v84
    %v288 = vunpack.c.l.b16 %v85
    %v289 = vunpack.c.l.b16 %v86
    %v290 = vunpack.c.l.b16 %v87
    %v291 = vunpack.c.l.b16 %v88
    %v292 = vunpack.c.l.b16 %v89
    %v293 = vunpack.c.l.b16 %v90
    %v294 = vunpack.c.l.b16 %v91
    %v295 = vunpack.c.l.b16 %v92
    %v296 = vunpack.c.l.b16 %v93
    %v297 = vunpack.c.l.b16 %v94
    %v298 = vunpack.c.l.b16 %v95
    %v299 = vunpack.c.l.b16 %v96
    %v300 = vunpack.c.l.b16 %v97
    %v301 = vunpack.c.l.b16 %v98
    %v302 = vunpack.c.l.b16 %v99
    %v303 = vunpack.c.l.b16 %v100
    %v304 = vunpack.c.l.b16 %v101
    %v305 = vunpack.c.l.b16 %v102
    %v306 = vunpack.c.l.b16 %v103
    %v307 = vunpack.c.l.b16 %v104
    %v308 = vunpack.c.l.b16 %v105
    %v309 = vunpack.c.l.b16 %v106
    %v310 = vunpack.c.l.b16 %v107
    %v311 = vunpack.c.l.b16 %v108
    %v312 = vunpack.c.l.b16 %v109
    %v313 = vunpack.c.l.b16 %v110
    %v314 = vunpack.c.l.b16 %v111
    %v315 = vunpack.c.l.b16 %v112
    %v316 = vunpack.c.l.b16 %v113
    %v317 = vunpack.c.l.b16 %v114
    %v318 = vunpack.c.l.b16 %v115
    %v319 = vunpack.c.l.b16 %v116
    %v320 = vunpack.c.l.b16 %v117
    %v321 = vunpack.c.l.b16 %v118
    %v322 = vunpack.c.l.b16 %v119
    %v323 = vunpack.c.l.b16 %v120
    %v324 = vunpack.c.l.b16 %v121
    %v325 = vunpack.c.l.b16 %v122
    %v326 = vunpack.c.l.b16 %v123
    %v327 = vunpack.c.l.b16 %v124
    %v328 = vunpack.c.l.b16 %v125
    %v329 = vunpack.c.l.b16 %v126
    %v330 = vunpack.c.l.b16 %v127
    %v331 = vunpack.c.l.b16 %v128
    %v332 = vunpack.c.l.b16 %v129
    %v333 = vunpack.c.l.b16 %v130
    %v334 = vunpack.c.l.b16 %v131
    %v335 = vunpack.c.l.b16 %v132
    %v336 = vunpack.c.l.b16 %v133
    %v337 = vunpack.c.l.b16 %v134
    %v338 = vunpack.c.l.b16 %v135
    %v339 = vunpack.c.l.b16 %v136
    %v340 = vunpack.c.l.b16 %v137
    %v341 = vunpack.c.l.b16 %v138
    %v342 = vunpack.c.l.b16 %v139
    %v343 = vunpack.c.l.b16 %v140
    %v344 = vunpack.c.l.b16 %v141
    %v345 = vunpack.c.l.b16 %v142
    %v346 = vunpack.c.l.b16 %v143
    %v347 = vunpack.c.l.b16 %v144
    %v348 = vunpack.c.l.b16 %v145
    %v349 = vunpack.c.l.b16 %v146
    %v350 = vunpack.c.l.b16 %v147
    %v351 = vpack.c.b16 %v254, %v253
    %v352 = vpack.c.b16 %v256, %v255
    %v353 = vpack.c.b16 %v258, %v257
    %v354 = vpack.c.b16 %v260, %v259
    %v355 = vpack.c.b16 %v262, %v261
    %v356 = vpack.c.b16 %v264, %v263
    %v357 = vpack.c.b16 %v266, %v265
    %v358 = vpack.c.b16 %v268, %v267
    %v359 = vpack.c.b16 %v270, %v269
    %v360 = vpack.c.b16 %v272, %v271
    %v361 = vpack.c.b16 %v274, %v273
    %v362 = vpack.c.b16 %v276, %v275
    %v363 = vpack.c.b16 %v278, %v277
    %v364 = vpack.c.b16 %v280, %v279
    %v365 = vpack.c.b16 %v282, %v281
    %v366 = vpack.c.b16 %v284, %v283
    %v367 = vpack.c.b16 %v286, %v285
    %v368 = vpack.c.b16 %v288, %v287
    %v369 = vpack.c.b16 %v290, %v289
    %v370 = vpack.c.b16 %v292, %v291
    %v371 = vpack.c.b16 %v294, %v293
    %v372 = vpack.c.b16 %v296, %v295
    %v373 = vpack.c.b16 %v298, %v297
    %v374 = vpack.c.b16 %v300, %v299
    %v375 = vpack.c.b16 %v302, %v301
    %v376 = vpack.c.b16 %v304, %v303
    %v377 = vpack.c.b16 %v306, %v305
    %v378 = vpack.c.b16 %v308, %v307
    %v379 = vpack.c.b16 %v310, %v309
    %v380 = vpack.c.b16 %v312, %v311
    %v381 = vpack.c.b16 %v314, %v313
    %v382 = vpack.c.b16 %v316, %v315
    %v383 = vpack.c.b16 %v318, %v317
    %v384 = vpack.c.b16 %v320, %v319
    %v385 = vpack.c.b16 %v322, %v321
    %v386 = vpack.c.b16 %v324, %v323
    %v387 = vpack.c.b16 %v326, %v325
    %v388 = vpack.c.b16 %v328, %v327
    %v389 = vpack.c.b16 %v330, %v329
    %v390 = vpack.c.b16 %v332, %v331
    %v391 = vpack.c.b16 %v334, %v333
    %v392 = vpack.c.b16 %v336, %v335
    %v393 = vpack.c.b16 %v338, %v337
    %v394 = vpack.c.b16 %v340, %v339
    %v395 = vpack.c.b16 %v342, %v341
    %v396 = vpack.c.b16 %v344, %v343
    %v397 = vpack.c.b16 %v346, %v345
    %v398 = vpack.c.b16 %v348, %v347
    %v399 = vpack.c.b16 %v350, %v349
    %vm449 = vcmask 130048
    %v451 = vsel %vm449, %v49, 0
    %453 = vmatprep.subr.bf16.mxu0 0
    %454 = vmatpush1.bf16.msra.mxu0 %v351
    %455 = vmatprep.subr.bf16.mxu0 0
    %456 = vmatpush1.bf16.msra.mxu0 %v352
    %457 = vmatprep.subr.bf16.mxu0 0
    %458 = vmatpush1.bf16.msra.mxu0 %v353
    %459 = vmatprep.subr.bf16.mxu0 0
    %460 = vmatpush1.bf16.msra.mxu0 %v354
    %461 = vmatprep.subr.bf16.mxu0 0
    %462 = vmatpush1.bf16.msra.mxu0 %v355
    %463 = vmatprep.subr.bf16.mxu0 0
    %464 = vmatpush1.bf16.msra.mxu0 %v356
    %465 = vmatprep.subr.bf16.mxu0 0
    %466 = vmatpush1.bf16.msra.mxu0 %v357
    %467 = vmatprep.subr.bf16.mxu0 0
    %468 = vmatpush1.bf16.msra.mxu0 %v358
    %469 = vmatprep.subr.bf16.mxu0 0
    %470 = vmatpush1.bf16.msra.mxu0 %v359
    %471 = vmatprep.subr.bf16.mxu0 0
    %472 = vmatpush1.bf16.msra.mxu0 %v360
    %473 = vmatprep.subr.bf16.mxu0 0
    %474 = vmatpush1.bf16.msra.mxu0 %v361
    %475 = vmatprep.subr.bf16.mxu0 0
    %476 = vmatpush1.bf16.msra.mxu0 %v362
    %477 = vmatprep.subr.bf16.mxu0 0
    %478 = vmatpush1.bf16.msra.mxu0 %v363
    %479 = vmatprep.subr.bf16.mxu0 0
    %480 = vmatpush1.bf16.msra.mxu0 %v364
    %481 = vmatprep.subr.bf16.mxu0 0
    %482 = vmatpush1.bf16.msra.mxu0 %v365
    %483 = vmatprep.subr.bf16.mxu0 0
    %484 = vmatpush1.bf16.msra.mxu0 %v366
    %485 = vmatprep.mubr.bf16.mxu0 %v44
    %486 = vmatmul.mubr.bf16.gmra.mrb[0].mxu0 %v43
    %v487 = vpop.f32.mrb[0].mxu0
    %v488 = vadd.f32 %v153, %v487
    %v489 = vpop.f32.mrb[0].mxu0
    %v490 = vpop.f32.mrb[0].mxu0
    %v491 = vadd.f32 %v153, %v490
    %v492 = vpop.f32.mrb[0].mxu0
    %493 = vdwg.mxu0
    %494 = vmatprep.subr.bf16.mxu0 0
    %495 = vmatpush1.bf16.msra.mxu0 %v367
    %496 = vmatprep.subr.bf16.mxu0 0
    %497 = vmatpush1.bf16.msra.mxu0 %v368
    %498 = vmatprep.subr.bf16.mxu0 0
    %499 = vmatpush1.bf16.msra.mxu0 %v369
    %500 = vmatprep.subr.bf16.mxu0 0
    %501 = vmatpush1.bf16.msra.mxu0 %v370
    %502 = vmatprep.subr.bf16.mxu0 0
    %503 = vmatpush1.bf16.msra.mxu0 %v371
    %504 = vmatprep.subr.bf16.mxu0 0
    %505 = vmatpush1.bf16.msra.mxu0 %v372
    %506 = vmatprep.subr.bf16.mxu0 0
    %507 = vmatpush1.bf16.msra.mxu0 %v373
    %508 = vmatprep.subr.bf16.mxu0 0
    %509 = vmatpush1.bf16.msra.mxu0 %v374
    %510 = vmatprep.subr.bf16.mxu0 0
    %511 = vmatpush1.bf16.msra.mxu0 %v375
    %512 = vmatprep.subr.bf16.mxu0 0
    %513 = vmatpush1.bf16.msra.mxu0 %v376
    %514 = vmatprep.subr.bf16.mxu0 0
    %515 = vmatpush1.bf16.msra.mxu0 %v377
    %516 = vmatprep.subr.bf16.mxu0 0
    %517 = vmatpush1.bf16.msra.mxu0 %v378
    %518 = vmatprep.subr.bf16.mxu0 0
    %519 = vmatpush1.bf16.msra.mxu0 %v379
    %520 = vmatprep.subr.bf16.mxu0 0
    %521 = vmatpush1.bf16.msra.mxu0 %v380
    %522 = vmatprep.subr.bf16.mxu0 0
    %523 = vmatpush1.bf16.msra.mxu0 %v381
    %524 = vmatprep.subr.bf16.mxu0 0
    %525 = vmatpush1.bf16.msra.mxu0 %v382
    %526 = vmatprep.mubr.bf16.mxu0 %v46
    %527 = vmatmul.mubr.bf16.gmra.mrb[0].mxu0 %v45
    %v528 = vpop.f32.mrb[0].mxu0
    %v529 = vadd.f32 %v488, %v528
    %v530 = vpop.f32.mrb[0].mxu0
    %v531 = vpop.f32.mrb[0].mxu0
    %v532 = vadd.f32 %v491, %v531
    %v533 = vpop.f32.mrb[0].mxu0
    %534 = vdwg.mxu0
    %535 = vmatprep.subr.bf16.mxu0 0
    %536 = vmatpush1.bf16.msra.mxu0 %v383
    %537 = vmatprep.subr.bf16.mxu0 0
    %538 = vmatpush1.bf16.msra.mxu0 %v384
    %539 = vmatprep.subr.bf16.mxu0 0
    %540 = vmatpush1.bf16.msra.mxu0 %v385
    %541 = vmatprep.subr.bf16.mxu0 0
    %542 = vmatpush1.bf16.msra.mxu0 %v386
    %543 = vmatprep.subr.bf16.mxu0 0
    %544 = vmatpush1.bf16.msra.mxu0 %v387
    %545 = vmatprep.subr.bf16.mxu0 0
    %546 = vmatpush1.bf16.msra.mxu0 %v388
    %547 = vmatprep.subr.bf16.mxu0 0
    %548 = vmatpush1.bf16.msra.mxu0 %v389
    %549 = vmatprep.subr.bf16.mxu0 0
    %550 = vmatpush1.bf16.msra.mxu0 %v390
    %551 = vmatprep.subr.bf16.mxu0 0
    %552 = vmatpush1.bf16.msra.mxu0 %v391
    %553 = vmatprep.subr.bf16.mxu0 0
    %554 = vmatpush1.bf16.msra.mxu0 %v392
    %555 = vmatprep.subr.bf16.mxu0 0
    %556 = vmatpush1.bf16.msra.mxu0 %v393
    %557 = vmatprep.subr.bf16.mxu0 0
    %558 = vmatpush1.bf16.msra.mxu0 %v394
    %559 = vmatprep.subr.bf16.mxu0 0
    %560 = vmatpush1.bf16.msra.mxu0 %v395
    %561 = vmatprep.subr.bf16.mxu0 0
    %562 = vmatpush1.bf16.msra.mxu0 %v396
    %563 = vmatprep.subr.bf16.mxu0 0
    %564 = vmatpush1.bf16.msra.mxu0 %v397
    %565 = vmatprep.subr.bf16.mxu0 0
    %566 = vmatpush1.bf16.msra.mxu0 %v398
    %567 = vmatprep.mubr.bf16.mxu0 %v48
    %568 = vmatmul.mubr.bf16.gmra.mrb[0].mxu0 %v47
    %v569 = vpop.f32.mrb[0].mxu0
    %v570 = vadd.f32 %v529, %v569
    %v571 = vpop.f32.mrb[0].mxu0
    %v572 = vpop.f32.mrb[0].mxu0
    %v573 = vadd.f32 %v532, %v572
    %v574 = vpop.f32.mrb[0].mxu0
    %575 = vdwg.mxu0
    %576 = vmatprep.subr.bf16.mxu0 0
    %577 = vmatpush1.bf16.msra.mxu0 %v399
    %578 = vmatprep.subr.bf16.mxu0 0
    %579 = vmatpush1.bf16.msra.mxu0 0
    %580 = vmatprep.subr.bf16.mxu0 0
    %581 = vmatpush1.bf16.msra.mxu0 0
    %582 = vmatprep.subr.bf16.mxu0 0
    %583 = vmatpush1.bf16.msra.mxu0 0
    %584 = vmatprep.subr.bf16.mxu0 0
    %585 = vmatpush1.bf16.msra.mxu0 0
    %586 = vmatprep.subr.bf16.mxu0 0
    %587 = vmatpush1.bf16.msra.mxu0 0
    %588 = vmatprep.subr.bf16.mxu0 0
    %589 = vmatpush1.bf16.msra.mxu0 0
    %590 = vmatprep.subr.bf16.mxu0 0
    %591 = vmatpush1.bf16.msra.mxu0 0
    %592 = vmatprep.subr.bf16.mxu0 0
    %593 = vmatpush1.bf16.msra.mxu0 0
    %594 = vmatprep.subr.bf16.mxu0 0
    %595 = vmatpush1.bf16.msra.mxu0 0
    %596 = vmatprep.subr.bf16.mxu0 0
    %597 = vmatpush1.bf16.msra.mxu0 0
    %598 = vmatprep.subr.bf16.mxu0 0
    %599 = vmatpush1.bf16.msra.mxu0 0
    %600 = vmatprep.subr.bf16.mxu0 0
    %601 = vmatpush1.bf16.msra.mxu0 0
    %602 = vmatprep.subr.bf16.mxu0 0
    %603 = vmatpush1.bf16.msra.mxu0 0
    %604 = vmatprep.subr.bf16.mxu0 0
    %605 = vmatpush1.bf16.msra.mxu0 0
    %606 = vmatprep.subr.bf16.mxu0 0
    %607 = vmatpush1.bf16.msra.mxu0 0
    %608 = vmatprep.mubr.bf16.mxu0 0
    %609 = vmatmul.mubr.bf16.gmra.mrb[0].mxu0 %v451
    %v610 = vpop.f32.mrb[0].mxu0
    %v611 = vadd.f32 %v570, %v610
    %v612 = vpop.f32.mrb[0].mxu0
    %v613 = vpop.f32.mrb[0].mxu0
    %v614 = vadd.f32 %v573, %v613
    %v615 = vpop.f32.mrb[0].mxu0
    %616 = vdwg.mxu0
    %v617 = vpack.c.bf16 %v614, %v611
    %v619 = vunpack.c.l.b16 %v617
    %v620 = vunpack.c.h.b16 %v617
    %v621 = vpack.c.b16 %v619, %v619
    %v622 = vpack.c.b16 %v620, %v620
    %625 = vst [vmem:[%s3] sm:$0xf] %v621
    %626 = vst [vmem:[%s3 + $0x4] sm:$0xf] %v622
    // Predicated region
    $region18: #{_lambda_.1} parent=1 // pred_check
      _
    $region19: #{_lambda_.1} parent=1 // pred_check_branch
      %628 = sbr.rel (0) target = $region21
    $region20: #{_lambda_.1} parent=1 // pred_region
      _
    $region21: #{_lambda_.1} parent=1 // pred_fallthru
      _
    // Predicated region
    $region22: #{_lambda_.1} parent=1 // pred_check
      _
    $region23: #{_lambda_.1} parent=1 // pred_check_branch
      %630 = sbr.rel (0) target = $region25
    $region24: #{_lambda_.1} parent=1 // pred_region
      _
    $region25: #{_lambda_.1} parent=1 // pred_fallthru
      _
    %631 = vsyncpa [#allocation3], 1

</llo_original>
